<compile_context>
chip_gen: v7x
topology: tpu7x:2x2x1
jax: 0.10.0
libtpu: 0.0.40
codegen_flags: <defaults>
</compile_context>

<pallas_src>
import jax
import jax.numpy as jnp
from jax.experimental import pallas as pl
from jax.experimental.pallas import tpu as pltpu


def _planar_kernel(zk_ref, u_ref, w_ref, b_ref, z_ref, ldj_ref):
    f32 = jnp.float32
    # Blocks arrive in natural (TILE_B, Z) layout (contiguous HBM slabs).
    # Transpose on-chip to batch-in-lanes (Z, TILE_B).
    zk = zk_ref[...].astype(f32).T        # (Z, T)
    u = u_ref[...].astype(f32).T          # (Z, T)
    w = w_ref[...].astype(f32).T          # (Z, T)
    bb = b_ref[...].astype(f32)           # (1, T) — already lane-major

    # uw = w . u (per batch row -> per lane)
    uw = jnp.sum(w * u, axis=0, keepdims=True)                      # (1, T)
    # Numerically stable softplus: max(x, 0) + log1p(exp(-|x|)).
    m_uw = jnp.maximum(uw, 0.0) + jnp.log1p(jnp.exp(-jnp.abs(uw))) - 1.0
    w_norm_sq = jnp.sum(w * w, axis=0, keepdims=True)               # (1, T)
    scale = (m_uw - uw) / w_norm_sq                                 # (1, T)

    # wzb = w . zk + b
    wzb = jnp.sum(w * zk, axis=0, keepdims=True) + bb               # (1, T)
    h = jnp.tanh(wzb)                                               # (1, T)

    # z = zk + u_hat * h with u_hat = u + scale*w fused (never materialized).
    z = zk + h * u + (h * scale) * w                                # (Z, T)
    z_ref[...] = z.T.astype(z_ref.dtype)                            # (T, Z) store

    # Exact identity: w . u_hat = uw + scale*w_norm_sq = m_uw, hence
    # log|1 + psi . u_hat| = log|1 + (1 - h^2) * m_uw|.
    ldj = jnp.log(jnp.abs(1.0 + (1.0 - h * h) * m_uw))              # (1, T)
    ldj_ref[...] = ldj.astype(ldj_ref.dtype)


def _cdiv(a, b):
    return -(-a // b)


def _round_up(x, m):
    return ((x + m - 1) // m) * m


def _plan_tiles(B, Z, *, max_tile=None):
    """Pick (tile, num_tiles, padded_B) for the batch grid axis."""
    # VMEM resident bytes per batch row: double-buffered pipeline blocks
    # (zk,u,w,b in; z,ldj out) + ~8 f32 Z-wide in-kernel intermediates
    # (transposed copies, fused products, z).  Budget ~12 MiB.
    row_vmem = (2 * (4 * Z + 2) + 8 * Z) * 4
    budget = 12 << 20
    tile = max(8, budget // row_vmem)
    if max_tile is not None:
        tile = max(8, min(tile, max_tile))

    row_hbm = (4 * Z + 2) * 4                    # HBM bytes moved per row
    num_tiles = _cdiv(B, tile)
    # Give the v7x megacore (2 TCs) several grid steps when the problem is
    # large enough that each step still moves >= ~1 MiB of HBM traffic.
    if B * row_hbm >= 4 * (1 << 20):
        num_tiles = max(num_tiles, 4)

    if num_tiles == 1:
        tile = _round_up(B, 8)                   # sublane alignment only
    else:
        # Multi-tile: 128-aligned so the (1, tile) b/log_det blocks are
        # lane-dense; rebalance so padding is < 128 rows per tile.
        tile = _round_up(_cdiv(B, num_tiles), 128)
        if max_tile is not None:
            tile = min(tile, _round_up(max_tile, 128))
        num_tiles = _cdiv(B, tile)
    return tile, num_tiles, tile * num_tiles


def planar_forward(zk, u, w, b, *, max_tile=None):
    """Pallas implementation of Planar.forward.

    zk: (B, Z), u: (B, Z, 1), w: (B, 1, Z), b: (B, 1, 1)
    Returns z: (B, Z) in zk.dtype, log_det_jacobian: (B,) in float32.
    """
    B, Z = zk.shape
    assert u.shape == (B, Z, 1) and w.shape == (B, 1, Z) and b.shape == (B, 1, 1)

    # Free (metadata-only, contiguous) reshapes — no HBM transposes/casts.
    u2 = u.reshape(B, Z)
    w2 = w.reshape(B, Z)
    b2 = b.reshape(1, B)

    tile, num_tiles, Bp = _plan_tiles(B, Z, max_tile=max_tile)

    if Bp != B:
        pad = Bp - B
        zk_in = jnp.pad(zk, ((0, pad), (0, 0)))
        u_in = jnp.pad(u2, ((0, pad), (0, 0)))
        # Pad w with ones so w_norm_sq stays nonzero on dead rows (no NaN noise).
        w_in = jnp.pad(w2, ((0, pad), (0, 0)), constant_values=1.0)
        b_in = jnp.pad(b2, ((0, 0), (0, pad)))
    else:
        zk_in, u_in, w_in, b_in = zk, u2, w2, b2

    itemsize = jnp.dtype(zk.dtype).itemsize
    cost = pl.CostEstimate(
        flops=int(B * (10 * Z + 30)),
        transcendentals=int(4 * B),
        bytes_accessed=int(B * Z * 3 * itemsize + B * itemsize   # reads
                           + B * Z * itemsize + B * 4),          # writes
    )

    z_out, ldj_out = pl.pallas_call(
        _planar_kernel,
        out_shape=(
            jax.ShapeDtypeStruct((Bp, Z), zk.dtype),
            jax.ShapeDtypeStruct((1, Bp), jnp.float32),
        ),
        grid_spec=pltpu.PrefetchScalarGridSpec(
            num_scalar_prefetch=0,
            grid=(num_tiles,),
            in_specs=[
                pl.BlockSpec((tile, Z), lambda i: (i, 0)),   # zk
                pl.BlockSpec((tile, Z), lambda i: (i, 0)),   # u
                pl.BlockSpec((tile, Z), lambda i: (i, 0)),   # w
                pl.BlockSpec((1, tile), lambda i: (0, i)),   # b (lane-dense)
            ],
            out_specs=[
                pl.BlockSpec((tile, Z), lambda i: (i, 0)),   # z, natural layout
                pl.BlockSpec((1, tile), lambda i: (0, i)),   # log_det (lane-dense)
            ],
        ),
        compiler_params=pltpu.CompilerParams(
            dimension_semantics=("parallel",),
            vmem_limit_bytes=32 << 20,
        ),
        cost_estimate=cost,
    )(zk_in, u_in, w_in, b_in)

    if Bp != B:
        z_out = z_out[:B]
        ldj = ldj_out[0, :B]
    else:
        ldj = ldj_out[0]
    return z_out, ldj


def planar_reference(zk, u, w, b):
    """Pure-JAX mirror of the PyTorch Planar.forward for verification."""
    zk3 = zk[:, :, None]                                          # (B, Z, 1)
    uw = jnp.matmul(w, u)                                         # (B, 1, 1)
    m_uw = -1.0 + jax.nn.softplus(uw)
    w_norm_sq = jnp.sum(w ** 2, axis=2, keepdims=True)            # (B, 1, 1)
    u_hat = u + (m_uw - uw) * jnp.transpose(w, (0, 2, 1)) / w_norm_sq
    wzb = jnp.matmul(w, zk3) + b                                  # (B, 1, 1)
    z = zk3 + u_hat * jnp.tanh(wzb)
    z = z[:, :, 0]
    psi = w * (1.0 - jnp.tanh(wzb) ** 2)                          # (B, 1, Z)
    ldj = jnp.log(jnp.abs(1.0 + jnp.matmul(psi, u_hat)))          # (B, 1, 1)
    return z, ldj[:, 0, 0]


if __name__ == "__main__":
    planar = jax.jit(planar_forward, static_argnames=("max_tile",))

    # Small case (matches the module's calling convention).
    B, Z = 2, 32
    key = jax.random.PRNGKey(0)
    k_zk, k_u, k_w, k_b = jax.random.split(key, 4)
    zk = jax.random.normal(k_zk, (B, Z), dtype=jnp.float32)
    u = jax.random.normal(k_u, (B, Z, 1), dtype=jnp.float32)
    w = jax.random.normal(k_w, (B, 1, Z), dtype=jnp.float32)
    b = jax.random.normal(k_b, (B, 1, 1), dtype=jnp.float32)

    z_out, ldj_out = planar(zk, u, w, b)
    jax.block_until_ready((z_out, ldj_out))
    z_ref, ldj_ref = planar_reference(zk, u, w, b)
    assert jnp.allclose(z_out, z_ref, atol=1e-4, rtol=1e-4)
    assert jnp.allclose(ldj_out, ldj_ref, atol=1e-4, rtol=1e-4)

    # Second check: non-aligned batch with multiple grid tiles (exercises
    # padding + batch tiling + on-chip transpose path).
    B2 = 300
    k_zk2, k_u2, k_w2, k_b2 = jax.random.split(jax.random.PRNGKey(1), 4)
    zk2 = jax.random.normal(k_zk2, (B2, Z), dtype=jnp.float32)
    u2 = jax.random.normal(k_u2, (B2, Z, 1), dtype=jnp.float32)
    w2 = jax.random.normal(k_w2, (B2, 1, Z), dtype=jnp.float32)
    b2 = jax.random.normal(k_b2, (B2, 1, 1), dtype=jnp.float32)

    z_out2, ldj_out2 = planar(zk2, u2, w2, b2, max_tile=128)
    jax.block_until_ready((z_out2, ldj_out2))
    z_ref2, ldj_ref2 = planar_reference(zk2, u2, w2, b2)
    assert jnp.allclose(z_out2, z_ref2, atol=1e-4, rtol=1e-4)
    assert jnp.allclose(ldj_out2, ldj_ref2, atol=1e-4, rtol=1e-4)

    print("KERNEL_OK")
</pallas_src>

<mosaic_0001>
module attributes {stable_mosaic.version = 11 : i64} {
  func.func @_planar_kernel(%arg0: i32, %arg1: memref<8x32xf32, #tpu.memory_space<vmem>>, %arg2: memref<8x32xf32, #tpu.memory_space<vmem>>, %arg3: memref<8x32xf32, #tpu.memory_space<vmem>>, %arg4: memref<1x8xf32, #tpu.memory_space<vmem>>, %arg5: memref<8x32xf32, #tpu.memory_space<vmem>>, %arg6: memref<1x8xf32, #tpu.memory_space<vmem>>) attributes {dimension_semantics = [#tpu.dimension_semantics<parallel>], iteration_bounds = array<i64: 1>, scalar_prefetch = 0 : i64, scratch_operands = 0 : i64, tpu.core_type = #tpu.core_type<tc>, window_params = [{transform_indices = @transform_0, window_bounds = array<i64: 8, 32>}, {transform_indices = @transform_1, window_bounds = array<i64: 8, 32>}, {transform_indices = @transform_2, window_bounds = array<i64: 8, 32>}, {transform_indices = @transform_3, window_bounds = array<i64: 1, 8>}, {transform_indices = @transform_4, window_bounds = array<i64: 8, 32>}, {transform_indices = @transform_5, window_bounds = array<i64: 1, 8>}]} {
    %c0 = arith.constant 0 : index
    %c0_0 = arith.constant 0 : index
    %0 = vector.load %arg1[%c0, %c0_0] : memref<8x32xf32, #tpu.memory_space<vmem>>, vector<8x32xf32>
    %1 = tpu.transpose %0, [1, 0] : vector<8x32xf32> -> vector<32x8xf32>
    %c0_1 = arith.constant 0 : index
    %c0_2 = arith.constant 0 : index
    %2 = vector.load %arg2[%c0_1, %c0_2] : memref<8x32xf32, #tpu.memory_space<vmem>>, vector<8x32xf32>
    %3 = tpu.transpose %2, [1, 0] : vector<8x32xf32> -> vector<32x8xf32>
    %c0_3 = arith.constant 0 : index
    %c0_4 = arith.constant 0 : index
    %4 = vector.load %arg3[%c0_3, %c0_4] : memref<8x32xf32, #tpu.memory_space<vmem>>, vector<8x32xf32>
    %5 = tpu.transpose %4, [1, 0] : vector<8x32xf32> -> vector<32x8xf32>
    %c0_5 = arith.constant 0 : index
    %c0_6 = arith.constant 0 : index
    %6 = vector.load %arg4[%c0_5, %c0_6] : memref<1x8xf32, #tpu.memory_space<vmem>>, vector<1x8xf32>
    %7 = arith.mulf %5, %3 : vector<32x8xf32>
    %cst = arith.constant dense<0.000000e+00> : vector<8xf32>
    %8 = vector.multi_reduction <add>, %7, %cst [0] : vector<32x8xf32> to vector<8xf32>
    %9 = vector.shape_cast %8 : vector<8xf32> to vector<1x8xf32>
    %cst_7 = arith.constant 0.000000e+00 : f32
    %10 = vector.broadcast %cst_7 : f32 to vector<1x8xf32>
    %11 = arith.maximumf %9, %10 : vector<1x8xf32>
    %12 = math.absf %9 : vector<1x8xf32>
    %cst_8 = arith.constant 0.000000e+00 : f32
    %13 = vector.broadcast %cst_8 : f32 to vector<1x8xf32>
    %14 = arith.subf %13, %12 : vector<1x8xf32>
    %15 = math.exp %14 : vector<1x8xf32>
    %16 = math.log1p %15 : vector<1x8xf32>
    %17 = arith.addf %11, %16 : vector<1x8xf32>
    %cst_9 = arith.constant 1.000000e+00 : f32
    %18 = vector.broadcast %cst_9 : f32 to vector<1x8xf32>
    %19 = arith.subf %17, %18 : vector<1x8xf32>
    %20 = arith.mulf %5, %5 : vector<32x8xf32>
    %cst_10 = arith.constant dense<0.000000e+00> : vector<8xf32>
    %21 = vector.multi_reduction <add>, %20, %cst_10 [0] : vector<32x8xf32> to vector<8xf32>
    %22 = vector.shape_cast %21 : vector<8xf32> to vector<1x8xf32>
    %23 = arith.subf %19, %9 : vector<1x8xf32>
    %24 = arith.divf %23, %22 : vector<1x8xf32>
    %25 = arith.mulf %5, %1 : vector<32x8xf32>
    %cst_11 = arith.constant dense<0.000000e+00> : vector<8xf32>
    %26 = vector.multi_reduction <add>, %25, %cst_11 [0] : vector<32x8xf32> to vector<8xf32>
    %27 = vector.shape_cast %26 : vector<8xf32> to vector<1x8xf32>
    %28 = arith.addf %27, %6 : vector<1x8xf32>
    %29 = math.tanh %28 : vector<1x8xf32>
    %30 = vector.broadcast %29 : vector<1x8xf32> to vector<32x8xf32>
    %31 = arith.mulf %30, %3 : vector<32x8xf32>
    %32 = arith.addf %1, %31 : vector<32x8xf32>
    %33 = arith.mulf %29, %24 : vector<1x8xf32>
    %34 = vector.broadcast %33 : vector<1x8xf32> to vector<32x8xf32>
    %35 = arith.mulf %34, %5 : vector<32x8xf32>
    %36 = arith.addf %32, %35 : vector<32x8xf32>
    %37 = tpu.transpose %36, [1, 0] : vector<32x8xf32> -> vector<8x32xf32>
    %c0_12 = arith.constant 0 : index
    %c0_13 = arith.constant 0 : index
    %38 = vector.load %arg5[%c0_12, %c0_13] : memref<8x32xf32, #tpu.memory_space<vmem>>, vector<8x32xf32>
    tpu.vector_store %arg5[%c0_12, %c0_13], %37 {strides = array<i32>} : memref<8x32xf32, #tpu.memory_space<vmem>>, vector<8x32xf32>,
    %39 = arith.mulf %29, %29 : vector<1x8xf32>
    %cst_14 = arith.constant 1.000000e+00 : f32
    %40 = vector.broadcast %cst_14 : f32 to vector<1x8xf32>
    %41 = arith.subf %40, %39 : vector<1x8xf32>
    %42 = arith.mulf %41, %19 : vector<1x8xf32>
    %cst_15 = arith.constant 1.000000e+00 : f32
    %43 = vector.broadcast %cst_15 : f32 to vector<1x8xf32>
    %44 = arith.addf %43, %42 : vector<1x8xf32>
    %45 = math.absf %44 : vector<1x8xf32>
    %46 = math.log %45 : vector<1x8xf32>
    %c0_16 = arith.constant 0 : index
    %c0_17 = arith.constant 0 : index
    %47 = vector.load %arg6[%c0_16, %c0_17] : memref<1x8xf32, #tpu.memory_space<vmem>>, vector<1x8xf32>
    tpu.vector_store %arg6[%c0_16, %c0_17], %46 {strides = array<i32>} : memref<1x8xf32, #tpu.memory_space<vmem>>, vector<1x8xf32>,
    return
  }
  func.func @transform_0(%arg0: i32) -> (i32, i32) {
    %c0_i32 = arith.constant 0 : i32
    %c0_i32_0 = arith.constant 0 : i32
    return %arg0, %c0_i32 : i32, i32
  }
  func.func @transform_1(%arg0: i32) -> (i32, i32) {
    %c0_i32 = arith.constant 0 : i32
    %c0_i32_0 = arith.constant 0 : i32
    return %arg0, %c0_i32 : i32, i32
  }
  func.func @transform_2(%arg0: i32) -> (i32, i32) {
    %c0_i32 = arith.constant 0 : i32
    %c0_i32_0 = arith.constant 0 : i32
    return %arg0, %c0_i32 : i32, i32
  }
  func.func @transform_3(%arg0: i32) -> (i32, i32) {
    %c0_i32 = arith.constant 0 : i32
    %c0_i32_0 = arith.constant 0 : i32
    return %c0_i32, %arg0 : i32, i32
  }
  func.func @transform_4(%arg0: i32) -> (i32, i32) {
    %c0_i32 = arith.constant 0 : i32
    %c0_i32_0 = arith.constant 0 : i32
    return %arg0, %c0_i32 : i32, i32
  }
  func.func @transform_5(%arg0: i32) -> (i32, i32) {
    %c0_i32 = arith.constant 0 : i32
    %c0_i32_0 = arith.constant 0 : i32
    return %c0_i32, %arg0 : i32, i32
  }
}

</mosaic_0001>

<llo_original>
// kernel: planar_forward.1
$region0: #{planar_forward.1}
  #allocation0 [shape = 'u32[]', space=smem, size = 0x4, offset = 0x4, fixed_abs, tag = 'smem constant byte address 0x4 - core index']
  #allocation1 [shape = 'u32[144,128]{1,0:T(1,128)}', space=vmem, size = 0x12000, scoped, tag = 'internal scratch']
  %s0 = inlined_call_operand.vmem [shape: f32[8,32], index: 0, kind: input, shape index: {}]
  %s1 = inlined_call_operand.vmem [shape: f32[8,32], index: 1, kind: input, shape index: {}]
  %s2 = inlined_call_operand.vmem [shape: f32[8,32], index: 2, kind: input, shape index: {}]
  %s3 = inlined_call_operand.vmem [shape: f32[1,8], index: 3, kind: input, shape index: {}]
  %s4 = inlined_call_operand.vmem [shape: f32[8,32], index: 4, kind: output, shape index: {0}]
  %s5 = inlined_call_operand.vmem [shape: f32[1,8], index: 5, kind: output, shape index: {1}]
  %6 = xla_tuple %s4, %s5
  %s7 = sld [smem:[#allocation0]]
  $region34: #{planar_forward.1} parent=0
    _
  %s9 = ssub.s32 1, %s7
  %s10 = scalar_select 0, %s9, %s7
  // Predicated region
  $region2: #{planar_forward.1} parent=0 // pred_check
    _
  $region3: #{planar_forward.1} parent=0 // pred_check_branch
    %12 = sbr.rel (0) target = $region5
  $region4: #{planar_forward.1} parent=0 // pred_region
    _
  $region5: #{planar_forward.1} parent=0 // pred_fallthru
    _
  // Predicated region
  $region6: #{planar_forward.1} parent=0 // pred_check
    _
  $region7: #{planar_forward.1} parent=0 // pred_check_branch
    %14 = sbr.rel (0) target = $region9
  $region8: #{planar_forward.1} parent=0 // pred_region
    _
  $region9: #{planar_forward.1} parent=0 // pred_fallthru
    _
  // Predicated region
  $region10: #{planar_forward.1} parent=0 // pred_check
    _
  $region11: #{planar_forward.1} parent=0 // pred_check_branch
    %16 = sbr.rel (0) target = $region13
  $region12: #{planar_forward.1} parent=0 // pred_region
    _
  $region13: #{planar_forward.1} parent=0 // pred_fallthru
    _
  // Predicated region
  $region14: #{planar_forward.1} parent=0 // pred_check
    _
  $region15: #{planar_forward.1} parent=0 // pred_check_branch
    %18 = sbr.rel (0) target = $region17
  $region16: #{planar_forward.1} parent=0 // pred_region
    _
  $region17: #{planar_forward.1} parent=0 // pred_fallthru
    _
  %v19 = vld [vmem:[%s0] sm:$0xff]
  %20 = vxpose.xlu0.b32.start [1/16] %v19, 128
  %21 = vxpose.xlu0.b32.cont [2/16] 0.0, 128
  %22 = vxpose.xlu0.b32.cont [3/16] 0.0, 128
  %23 = vxpose.xlu0.b32.cont [4/16] 0.0, 128
  %24 = vxpose.xlu0.b32.cont [5/16] 0.0, 128
  %25 = vxpose.xlu0.b32.cont [6/16] 0.0, 128
  %26 = vxpose.xlu0.b32.cont [7/16] 0.0, 128
  %27 = vxpose.xlu0.b32.cont [8/16] 0.0, 128
  %28 = vxpose.xlu0.b32.cont [9/16] 0.0, 128
  %29 = vxpose.xlu0.b32.cont [10/16] 0.0, 128
  %30 = vxpose.xlu0.b32.cont [11/16] 0.0, 128
  %31 = vxpose.xlu0.b32.cont [12/16] 0.0, 128
  %32 = vxpose.xlu0.b32.cont [13/16] 0.0, 128
  %33 = vxpose.xlu0.b32.cont [14/16] 0.0, 128
  %34 = vxpose.xlu0.b32.cont [15/16] 0.0, 128
  %35 = vxpose.xlu0.b32.end [16/16] 0.0, 128
  %v36 = vpop.trf.xlu0
  %v37 = vpop.trf.xlu0
  %v38 = vpop.trf.xlu0
  %v39 = vpop.trf.xlu0
  %v40 = vpop.trf.xlu0
  %v41 = vpop.trf.xlu0
  %v42 = vpop.trf.xlu0
  %v43 = vpop.trf.xlu0
  %v44 = vpop.trf.xlu0
  %v45 = vpop.trf.xlu0
  %v46 = vpop.trf.xlu0
  %v47 = vpop.trf.xlu0
  %v48 = vpop.trf.xlu0
  %v49 = vpop.trf.xlu0
  %v50 = vpop.trf.xlu0
  %v51 = vpop.trf.xlu0
  %v52 = vld [vmem:[%s1] sm:$0xff]
  %53 = vxpose.xlu0.b32.start [1/16] %v52, 128
  %54 = vxpose.xlu0.b32.cont [2/16] 0.0, 128
  %55 = vxpose.xlu0.b32.cont [3/16] 0.0, 128
  %56 = vxpose.xlu0.b32.cont [4/16] 0.0, 128
  %57 = vxpose.xlu0.b32.cont [5/16] 0.0, 128
  %58 = vxpose.xlu0.b32.cont [6/16] 0.0, 128
  %59 = vxpose.xlu0.b32.cont [7/16] 0.0, 128
  %60 = vxpose.xlu0.b32.cont [8/16] 0.0, 128
  %61 = vxpose.xlu0.b32.cont [9/16] 0.0, 128
  %62 = vxpose.xlu0.b32.cont [10/16] 0.0, 128
  %63 = vxpose.xlu0.b32.cont [11/16] 0.0, 128
  %64 = vxpose.xlu0.b32.cont [12/16] 0.0, 128
  %65 = vxpose.xlu0.b32.cont [13/16] 0.0, 128
  %66 = vxpose.xlu0.b32.cont [14/16] 0.0, 128
  %67 = vxpose.xlu0.b32.cont [15/16] 0.0, 128
  %68 = vxpose.xlu0.b32.end [16/16] 0.0, 128
  %v69 = vpop.trf.xlu0
  %v70 = vpop.trf.xlu0
  %v71 = vpop.trf.xlu0
  %v72 = vpop.trf.xlu0
  %v73 = vpop.trf.xlu0
  %v74 = vpop.trf.xlu0
  %v75 = vpop.trf.xlu0
  %v76 = vpop.trf.xlu0
  %v77 = vpop.trf.xlu0
  %v78 = vpop.trf.xlu0
  %v79 = vpop.trf.xlu0
  %v80 = vpop.trf.xlu0
  %v81 = vpop.trf.xlu0
  %v82 = vpop.trf.xlu0
  %v83 = vpop.trf.xlu0
  %v84 = vpop.trf.xlu0
  %v85 = vld [vmem:[%s2] sm:$0xff]
  %86 = vxpose.xlu0.b32.start [1/16] %v85, 128
  %87 = vxpose.xlu0.b32.cont [2/16] 0.0, 128
  %88 = vxpose.xlu0.b32.cont [3/16] 0.0, 128
  %89 = vxpose.xlu0.b32.cont [4/16] 0.0, 128
  %90 = vxpose.xlu0.b32.cont [5/16] 0.0, 128
  %91 = vxpose.xlu0.b32.cont [6/16] 0.0, 128
  %92 = vxpose.xlu0.b32.cont [7/16] 0.0, 128
  %93 = vxpose.xlu0.b32.cont [8/16] 0.0, 128
  %94 = vxpose.xlu0.b32.cont [9/16] 0.0, 128
  %95 = vxpose.xlu0.b32.cont [10/16] 0.0, 128
  %96 = vxpose.xlu0.b32.cont [11/16] 0.0, 128
  %97 = vxpose.xlu0.b32.cont [12/16] 0.0, 128
  %98 = vxpose.xlu0.b32.cont [13/16] 0.0, 128
  %99 = vxpose.xlu0.b32.cont [14/16] 0.0, 128
  %100 = vxpose.xlu0.b32.cont [15/16] 0.0, 128
  %101 = vxpose.xlu0.b32.end [16/16] 0.0, 128
  %v102 = vpop.trf.xlu0
  %v103 = vpop.trf.xlu0
  %v104 = vpop.trf.xlu0
  %v105 = vpop.trf.xlu0
  %v106 = vpop.trf.xlu0
  %v107 = vpop.trf.xlu0
  %v108 = vpop.trf.xlu0
  %v109 = vpop.trf.xlu0
  %v110 = vpop.trf.xlu0
  %v111 = vpop.trf.xlu0
  %v112 = vpop.trf.xlu0
  %v113 = vpop.trf.xlu0
  %v114 = vpop.trf.xlu0
  %v115 = vpop.trf.xlu0
  %v116 = vpop.trf.xlu0
  %v117 = vpop.trf.xlu0
  %v118 = vld [vmem:[%s3] sm:$0x1]
  %v119 = vmul.f32 %v102, %v69
  %v120 = vmul.f32 %v103, %v70
  %v121 = vmul.f32 %v104, %v71
  %v122 = vmul.f32 %v105, %v72
  %vm123 = vcmask 64512
  %v124 = vsel %vm123, %v119, 0.0
  %v125 = vsel %vm123, %v120, 0.0
  %v126 = vadd.f32 %v124, %v125
  %v127 = vsel %vm123, %v121, 0.0
  %v128 = vadd.f32 %v126, %v127
  %v129 = vsel %vm123, %v122, 0.0
  %v130 = vadd.f32 %v128, %v129
  %v131 = vrot.slane %v130, 4
  %v132 = vadd.f32 %v130, %v131
  %v133 = vrot.slane %v132, 2
  %v134 = vadd.f32 %v132, %v133
  %v135 = vrot.slane %v134, 1
  %v136 = vadd.f32 %v134, %v135
  %v137 = vmax.f32 %v136, 0.0
  %v138 = vand.u32 2147483647, %v136
  %v139 = vsub.f32 0.0, %v138
  %v140 = vmul.f32 %v139, 1.442695
  %v141 = vpow.pop %v140
  %v142 = vadd.f32 %v141, 1.0
  %v143 = vlog2.pop %v142
  %v144 = vmul.f32 %v143, 0.6931472
  %v145 = vmul.f32 -0.5, %v141
  %v146 = vadd.f32 %v145, 1.0
  %v147 = vmul.f32 %v146, %v141
  %v148 = vand.u32 2147483647, %v141
  %vm149 = vcmp.lt.f32.partialorder %v148, 0.0004427343
  %v150 = vsel %vm149, %v147, %v144
  %v151 = vadd.f32 %v137, %v150
  %v152 = vsub.f32 %v151, 1.0
  %v153 = vmul.f32 %v102, %v102
  %v154 = vmul.f32 %v103, %v103
  %v155 = vmul.f32 %v104, %v104
  %v156 = vmul.f32 %v105, %v105
  %v157 = vsel %vm123, %v153, 0.0
  %v158 = vsel %vm123, %v154, 0.0
  %v159 = vadd.f32 %v157, %v158
  %v160 = vsel %vm123, %v155, 0.0
  %v161 = vadd.f32 %v159, %v160
  %v162 = vsel %vm123, %v156, 0.0
  %v163 = vadd.f32 %v161, %v162
  %v164 = vrot.slane %v163, 4
  %v165 = vadd.f32 %v163, %v164
  %v166 = vrot.slane %v165, 2
  %v167 = vadd.f32 %v165, %v166
  %v168 = vrot.slane %v167, 1
  %v169 = vadd.f32 %v167, %v168
  %v170 = vsub.f32 %v152, %v136
  %v171 = vrcp.pop %v169
  %v172 = vmul.f32 %v170, %v171
  %v173 = vmul.f32 %v102, %v36
  %v174 = vmul.f32 %v103, %v37
  %v175 = vmul.f32 %v104, %v38
  %v176 = vmul.f32 %v105, %v39
  %v177 = vsel %vm123, %v173, 0.0
  %v178 = vsel %vm123, %v174, 0.0
  %v179 = vadd.f32 %v177, %v178
  %v180 = vsel %vm123, %v175, 0.0
  %v181 = vadd.f32 %v179, %v180
  %v182 = vsel %vm123, %v176, 0.0
  %v183 = vadd.f32 %v181, %v182
  %v184 = vrot.slane %v183, 4
  %v185 = vadd.f32 %v183, %v184
  %v186 = vrot.slane %v185, 2
  %v187 = vadd.f32 %v185, %v186
  %v188 = vrot.slane %v187, 1
  %v189 = vadd.f32 %v187, %v188
  %v190 = vadd.f32 %v189, %v118
  %v191 = vtanh.pop %v190
  %v192 = vlaneseq
  %v193 = vshrl.u32 %v192, 7
  %v194 = vsub.s32 0, %v193
  %v195 = vrot.slane %v191, %v194
  %v196 = vmul.f32 %v195, %v69
  %v197 = vmul.f32 %v195, %v70
  %v198 = vmul.f32 %v195, %v71
  %v199 = vmul.f32 %v195, %v72
  %v200 = vadd.f32 %v36, %v196
  %v201 = vadd.f32 %v37, %v197
  %v202 = vadd.f32 %v38, %v198
  %v203 = vadd.f32 %v39, %v199
  %v204 = vmul.f32 %v191, %v172
  %v205 = vlaneseq
  %v206 = vshrl.u32 %v205, 7
  %v207 = vsub.s32 0, %v206
  %v208 = vrot.slane %v204, %v207
  %v209 = vmul.f32 %v208, %v102
  %v210 = vmul.f32 %v208, %v103
  %v211 = vmul.f32 %v208, %v104
  %v212 = vmul.f32 %v208, %v105
  %v213 = vadd.f32 %v200, %v209
  %v214 = vadd.f32 %v201, %v210
  %v215 = vadd.f32 %v202, %v211
  %v216 = vadd.f32 %v203, %v212
  %217 = vxpose.xlu0.b32.start [1/16] %v213, 128
  %218 = vxpose.xlu0.b32.cont [2/16] %v214, 128
  %219 = vxpose.xlu0.b32.cont [3/16] %v215, 128
  %220 = vxpose.xlu0.b32.cont [4/16] %v216, 128
  %221 = vxpose.xlu0.b32.cont [5/16] 0.0, 128
  %222 = vxpose.xlu0.b32.cont [6/16] 0.0, 128
  %223 = vxpose.xlu0.b32.cont [7/16] 0.0, 128
  %224 = vxpose.xlu0.b32.cont [8/16] 0.0, 128
  %225 = vxpose.xlu0.b32.cont [9/16] 0.0, 128
  %226 = vxpose.xlu0.b32.cont [10/16] 0.0, 128
  %227 = vxpose.xlu0.b32.cont [11/16] 0.0, 128
  %228 = vxpose.xlu0.b32.cont [12/16] 0.0, 128
  %229 = vxpose.xlu0.b32.cont [13/16] 0.0, 128
  %230 = vxpose.xlu0.b32.cont [14/16] 0.0, 128
  %231 = vxpose.xlu0.b32.cont [15/16] 0.0, 128
  %232 = vxpose.xlu0.b32.end [16/16] 0.0, 128
  %v233 = vpop.trf.xlu0
  %v234 = vpop.trf.xlu0
  %v235 = vpop.trf.xlu0
  %v236 = vpop.trf.xlu0
  %v237 = vpop.trf.xlu0
  %v238 = vpop.trf.xlu0
  %v239 = vpop.trf.xlu0
  %v240 = vpop.trf.xlu0
  %v241 = vpop.trf.xlu0
  %v242 = vpop.trf.xlu0
  %v243 = vpop.trf.xlu0
  %v244 = vpop.trf.xlu0
  %v245 = vpop.trf.xlu0
  %v246 = vpop.trf.xlu0
  %v247 = vpop.trf.xlu0
  %v248 = vpop.trf.xlu0
  %vm249 = vcmask 261120
  %250 = vst.msk [vmem:[%s4] sm:$0xff] %vm249, %v233
  %v251 = vmul.f32 %v191, %v191
  %v252 = vsub.f32 1.0, %v251
  %v253 = vmul.f32 %v252, %v152
  %v254 = vadd.f32 %v253, 1.0
  %v255 = vand.u32 2147483647, %v254
  %v256 = vlog2.pop %v255
  %v257 = vmul.f32 %v256, 0.6931472
  %vm258 = vcmask 57344
  %259 = vst.msk [vmem:[%s5] sm:$0x1] %vm258, %v257
  // Predicated region
  $region18: #{planar_forward.1} parent=0 // pred_check
    _
  $region19: #{planar_forward.1} parent=0 // pred_check_branch
    %261 = sbr.rel (0) target = $region21
  $region20: #{planar_forward.1} parent=0 // pred_region
    _
  $region21: #{planar_forward.1} parent=0 // pred_fallthru
    _
  // Predicated region
  $region22: #{planar_forward.1} parent=0 // pred_check
    _
  $region23: #{planar_forward.1} parent=0 // pred_check_branch
    %263 = sbr.rel (0) target = $region25
  $region24: #{planar_forward.1} parent=0 // pred_region
    _
  $region25: #{planar_forward.1} parent=0 // pred_fallthru
    _
  // Predicated region
  $region26: #{planar_forward.1} parent=0 // pred_check
    _
  $region27: #{planar_forward.1} parent=0 // pred_check_branch
    %265 = sbr.rel (0) target = $region29
  $region28: #{planar_forward.1} parent=0 // pred_region
    _
  $region29: #{planar_forward.1} parent=0 // pred_fallthru
    _
  // Predicated region
  $region30: #{planar_forward.1} parent=0 // pred_check
    _
  $region31: #{planar_forward.1} parent=0 // pred_check_branch
    %267 = sbr.rel (0) target = $region33
  $region32: #{planar_forward.1} parent=0 // pred_region
    _
  $region33: #{planar_forward.1} parent=0 // pred_fallthru
    _

</llo_original>
